<compile_context>
chip_gen: v6e
topology: v6e:2x2x1
jax: 0.10.0
libtpu: 0.0.40
codegen_flags: <defaults>
</compile_context>

<pallas_src>
import jax
import jax.numpy as jnp
from jax.experimental import pallas as pl
from jax.experimental.pallas import tpu as pltpu


def _total_loss_kernel(in_ref, out_ref):
    # in_ref:  SMEM f32[4] = [loss_cls, loss_alig, lambda, pad]
    # out_ref: SMEM f32[1]
    out_ref[0] = in_ref[0] + in_ref[2] * in_ref[1]


def _total_loss_pallas(loss_cls, loss_alig, lambda_param):
    packed = jnp.stack(
        [
            jnp.asarray(loss_cls, jnp.float32).reshape(()),
            jnp.asarray(loss_alig, jnp.float32).reshape(()),
            jnp.asarray(lambda_param, jnp.float32).reshape(()),
            jnp.float32(0.0),  # pad to 4 elements (16 bytes)
        ]
    )
    out = pl.pallas_call(
        _total_loss_kernel,
        out_shape=jax.ShapeDtypeStruct((1,), jnp.float32),
        in_specs=[pl.BlockSpec(memory_space=pltpu.SMEM)],
        out_specs=pl.BlockSpec(memory_space=pltpu.SMEM),
        cost_estimate=pl.CostEstimate(flops=2, transcendentals=0, bytes_accessed=20),
    )(packed)
    return out[0]


@jax.custom_vjp
def total_loss(loss_cls, loss_alig, lambda_param):
    """loss_cls + lambda_param * loss_alig (forward via a Pallas TPU kernel)."""
    return _total_loss_pallas(loss_cls, loss_alig, lambda_param)


def _total_loss_fwd(loss_cls, loss_alig, lambda_param):
    y = _total_loss_pallas(loss_cls, loss_alig, lambda_param)
    return y, (jnp.asarray(loss_alig, jnp.float32),
               jnp.asarray(lambda_param, jnp.float32))


def _total_loss_bwd(res, g):
    loss_alig, lambda_param = res
    g = jnp.asarray(g, jnp.float32)
    # d/d loss_cls = 1, d/d loss_alig = lambda, d/d lambda = loss_alig
    return (g, g * lambda_param, g * loss_alig)


total_loss.defvjp(_total_loss_fwd, _total_loss_bwd)


if __name__ == "__main__":
    key = jax.random.PRNGKey(0)
    k1, k2 = jax.random.split(key)

    # Synthetic scalar losses, as TotalLoss.forward expects.
    loss_cls = jax.random.uniform(k1, (), jnp.float32) * 2.0
    loss_alig = jax.random.uniform(k2, (), jnp.float32) * 2.0

    # nn.Parameter(torch.tensor(1.0)) -> deterministic init to 1.0
    lambda_param = jnp.float32(1.0)

    total = total_loss(loss_cls, loss_alig, lambda_param)
    total = jax.block_until_ready(total)

    # Forward sanity check against pure-JAX reference.
    ref = loss_cls + lambda_param * loss_alig
    assert jnp.allclose(total, ref, rtol=1e-6, atol=1e-6), (total, ref)

    # Gradient sanity check (lambda is a learnable parameter in the spec).
    grads = jax.grad(total_loss, argnums=(0, 1, 2))(loss_cls, loss_alig, lambda_param)
    grads = jax.block_until_ready(grads)
    assert jnp.allclose(grads[0], 1.0, atol=1e-6)
    assert jnp.allclose(grads[1], lambda_param, atol=1e-6)
    assert jnp.allclose(grads[2], loss_alig, atol=1e-6)

    print("KERNEL_OK")
</pallas_src>

<mosaic_0001>
module attributes {stable_mosaic.version = 11 : i64} {
  func.func @_total_loss_kernel(%arg0: memref<4xf32, #tpu.memory_space<smem>>, %arg1: memref<1xf32, #tpu.memory_space<smem>>) attributes {dimension_semantics = [], scalar_prefetch = 0 : i64, scratch_operands = 0 : i64, tpu.core_type = #tpu.core_type<tc>} {
    %c0 = arith.constant 0 : index
    %0 = memref.load %arg0[%c0] : memref<4xf32, #tpu.memory_space<smem>>
    %c2 = arith.constant 2 : index
    %1 = memref.load %arg0[%c2] : memref<4xf32, #tpu.memory_space<smem>>
    %c1 = arith.constant 1 : index
    %2 = memref.load %arg0[%c1] : memref<4xf32, #tpu.memory_space<smem>>
    %3 = arith.mulf %1, %2 : f32
    %4 = arith.addf %0, %3 : f32
    %c0_0 = arith.constant 0 : index
    %5 = memref.load %arg1[%c0_0] : memref<1xf32, #tpu.memory_space<smem>>
    memref.store %4, %arg1[%c0_0] : memref<1xf32, #tpu.memory_space<smem>>
    return
  }
}

</mosaic_0001>

<llo_original>
// kernel: tpu_custom_call.1
$region0: #{tpu_custom_call.1}
  #allocation0 [shape = 'u32[]', space=smem, size = 0x4, offset = 0x4, fixed_abs, tag = 'smem constant byte address 0x4 - core index']
  #allocation1 [shape = 'u32[144,128]{1,0:T(1,128)}', space=vmem, size = 0x12000, scoped, tag = 'internal scratch']
  %s0 = inlined_call_operand.hbm [shape: f32[4], index: 0, kind: input, shape index: {}]
  %s1 = inlined_call_operand.hbm [shape: f32[1], index: 1, kind: output, shape index: {}]
  %s2 = sld [smem:[#allocation0]]
  $region18: #{tpu_custom_call.1} parent=0
    _
  %s4 = ssub.s32 1, %s2
  %s5 = scalar_select 0, %s4, %s2
  $region1: #{tpu_custom_call.1} parent=0
    #allocation2 [shape = 'u8[512]{0}', space=smem, size = 0x200, scoped, tag = 'input window, operand 0, single buffered']
    #allocation3 [shape = 's32[1]{0}', space=sflag, size = 0x4, scoped, tag = 'scoped memory for tpu_custom_call.1']
    #allocation4 [shape = 's32[1]{0}', space=sflag, size = 0x4, scoped, tag = 'scoped memory for tpu_custom_call.1']
    #allocation5 [shape = 'u8[512]{0}', space=smem, size = 0x200, scoped, tag = 'output window, operand 0, single buffered']
    %6 = vsyncpa [#allocation3], 0
    %7 = vsyncpa [#allocation4], 0
    // Predicated region
    $region2: #{tpu_custom_call.1} parent=1 // pred_check
      _
    $region3: #{tpu_custom_call.1} parent=1 // pred_check_branch
      %9 = sbr.rel (0) target = $region5
    $region4: #{tpu_custom_call.1} parent=1 // pred_region
      %s11 = ssub.s32 16, 16
      %12 = vsyncadd [#allocation3], %s11
      %15 = dma.hbm_to_smem %s0, 16, [#allocation2], [#allocation3]
    $region5: #{tpu_custom_call.1} parent=1 // pred_fallthru
      _
    // Predicated region
    $region6: #{tpu_custom_call.1} parent=1 // pred_check
      _
    $region7: #{tpu_custom_call.1} parent=1 // pred_check_branch
      %17 = sbr.rel (0) target = $region9
    $region8: #{tpu_custom_call.1} parent=1 // pred_region
      %18 = dma.done [#allocation3], 16
    $region9: #{tpu_custom_call.1} parent=1 // pred_fallthru
      _
    %19 = sfence
    %s20 = sld [smem:[#allocation2]]
    %s21 = sld [smem:[#allocation2 + $0x2]]
    %s22 = sld [smem:[#allocation2 + $0x1]]
    %s23 = smul.f32 %s21, %s22
    %s24 = sadd.f32 %s20, %s23
    %s25 = scalar_lea.smem [#allocation5], 0
    %26 = sst [smem:[%s25]] %s24
    // Predicated region
    $region10: #{tpu_custom_call.1} parent=1 // pred_check
      _
    $region11: #{tpu_custom_call.1} parent=1 // pred_check_branch
      %28 = sbr.rel (0) target = $region13
    $region12: #{tpu_custom_call.1} parent=1 // pred_region
      %s30 = ssub.s32 16, 16
      %31 = vsyncadd [#allocation4], %s30
      %34 = dma.smem_to_hbm [#allocation5], 16, %s1, [#allocation4]
    $region13: #{tpu_custom_call.1} parent=1 // pred_fallthru
      _
    // Predicated region
    $region14: #{tpu_custom_call.1} parent=1 // pred_check
      _
    $region15: #{tpu_custom_call.1} parent=1 // pred_check_branch
      %36 = sbr.rel (0) target = $region17
    $region16: #{tpu_custom_call.1} parent=1 // pred_region
      %37 = dma.done [#allocation4], 16
    $region17: #{tpu_custom_call.1} parent=1 // pred_fallthru
      _
    %38 = sfence
    %39 = vsyncpa [#allocation3], 1
    %40 = vsyncpa [#allocation4], 1

</llo_original>
